<compile_context>
chip_gen: v7x
topology: tpu7x:2x2x1
jax: 0.10.0
libtpu: 0.0.40
codegen_flags: <defaults>
</compile_context>

<pallas_src>
import jax
import jax.numpy as jnp
from jax.experimental import pallas as pl
from jax.experimental.pallas import tpu as pltpu


# -----------------------------------------------------------------------------
# Kernel: elementwise multiply of an x tile by a per-row 0/1 keep mask.
#   x_ref / o_ref : (TR, TL) tile
#   keep_ref      : (TR, 1)  per-row mask, lane-broadcast by the VPU (free)
# -----------------------------------------------------------------------------
def _dropout_mul_kernel(x_ref, keep_ref, o_ref):
    o_ref[...] = x_ref[...] * keep_ref[...]


def _largest_divisor_tile(dim, align, max_tile):
    """Largest multiple of `align` that divides `dim` and is <= max_tile.

    Falls back to the full dimension when `dim` is not a multiple of `align`
    (a full-extent block is always legal on TPU)."""
    if dim % align != 0 or dim <= align:
        return dim
    best = align
    t = align
    limit = min(dim, max_tile)
    while t <= limit:
        if dim % t == 0:
            best = t
        t += align
    return best


def dropout_layer_forward(x, key, *, max_block_bytes=2 << 20):
    """Replicates dropout_layer.forward.

    x:   (B, C, L) float array
    key: jax PRNG key standing in for np.random.rand on the host
         (per-channel keep prob 0.8, no rescaling).
    """
    B, C, L = x.shape
    R = B * C

    # Mask generation is host-side glue (the PyTorch module uses host numpy).
    keep = (jax.random.uniform(key, (C,)) > 0.2).astype(x.dtype)        # (C,)
    # Per-row mask for the flattened (B*C, L) view: only B*C scalars streamed.
    keep_rows = jnp.tile(keep, B)[:, None]                              # (R, 1)

    # Lane-dense 2-D view: rows = B*C (sublane axis), cols = L (lane axis).
    x2 = x.reshape(R, L)
    itemsize = jnp.dtype(x.dtype).itemsize

    # Lane tile: multiple of 128 when possible (unmasked vst), capped at 1024.
    TL = _largest_divisor_tile(L, 128, 1024)
    # Row tile: multiple of 8 sublanes, sized so one block stays <= ~2 MiB.
    # x + out double-buffered -> <= ~8 MiB VMEM: fits every generation.
    max_rows = max(8, max_block_bytes // max(1, TL * itemsize))
    TR = _largest_divisor_tile(R, 8, max_rows)

    grid = (R // TR, L // TL)

    out2 = pl.pallas_call(
        _dropout_mul_kernel,
        out_shape=jax.ShapeDtypeStruct((R, L), x.dtype),
        grid_spec=pltpu.PrefetchScalarGridSpec(
            num_scalar_prefetch=0,
            grid=grid,
            in_specs=[
                pl.BlockSpec((TR, TL), lambda r, l: (r, l)),
                pl.BlockSpec((TR, 1), lambda r, l: (r, 0)),
            ],
            out_specs=pl.BlockSpec((TR, TL), lambda r, l: (r, l)),
        ),
        compiler_params=pltpu.CompilerParams(
            # Both axes independent -> v7x megacore shards them; no-op on v5e/v6e.
            dimension_semantics=("parallel", "parallel"),
            # Explicit budget: within v7x's 64 MiB physical VMEM, well under
            # v5e/v6e's 128 MiB; larger than the v5e 16 MiB scoped default.
            vmem_limit_bytes=48 << 20,
        ),
        # NOTE: could add input_output_aliases={0: 0} if the caller does not
        # need the pre-dropout activation (saves one HBM buffer, not bytes moved).
    )(x2, keep_rows)

    return out2.reshape(B, C, L)


if __name__ == "__main__":
    root = jax.random.PRNGKey(0)
    k_x, k_mask = jax.random.split(root)

    B, C, L = 2, 4, 16
    x = jax.random.normal(k_x, (B, C, L), dtype=jnp.float32)

    y = dropout_layer_forward(x, k_mask)
    jax.block_until_ready(y)

    # Pure-JAX reference with the same mask (no rescale, broadcast over B and L).
    keep = (jax.random.uniform(k_mask, (C,)) > 0.2).astype(x.dtype)
    ref = x * keep[None, :, None]
    assert y.shape == x.shape and y.dtype == x.dtype
    assert jnp.allclose(y, ref), "mismatch vs reference"

    print("KERNEL_OK")
</pallas_src>

<mosaic_0001>
module attributes {stable_mosaic.version = 11 : i64} {
  func.func @_dropout_mul_kernel(%arg0: i32, %arg1: i32, %arg2: memref<8x16xf32, #tpu.memory_space<vmem>>, %arg3: memref<8x1xf32, #tpu.memory_space<vmem>>, %arg4: memref<8x16xf32, #tpu.memory_space<vmem>>) attributes {dimension_semantics = [#tpu.dimension_semantics<parallel>, #tpu.dimension_semantics<parallel>], iteration_bounds = array<i64: 1, 1>, scalar_prefetch = 0 : i64, scratch_operands = 0 : i64, tpu.core_type = #tpu.core_type<tc>, window_params = [{transform_indices = @transform_0, window_bounds = array<i64: 8, 16>}, {transform_indices = @transform_1, window_bounds = array<i64: 8, 1>}, {transform_indices = @transform_2, window_bounds = array<i64: 8, 16>}]} {
    %c0 = arith.constant 0 : index
    %c0_0 = arith.constant 0 : index
    %0 = vector.load %arg2[%c0, %c0_0] : memref<8x16xf32, #tpu.memory_space<vmem>>, vector<8x16xf32>
    %c0_1 = arith.constant 0 : index
    %c0_2 = arith.constant 0 : index
    %1 = vector.load %arg3[%c0_1, %c0_2] : memref<8x1xf32, #tpu.memory_space<vmem>>, vector<8x1xf32>
    %2 = vector.broadcast %1 : vector<8x1xf32> to vector<8x16xf32>
    %3 = arith.mulf %0, %2 : vector<8x16xf32>
    %c0_3 = arith.constant 0 : index
    %c0_4 = arith.constant 0 : index
    %4 = vector.load %arg4[%c0_3, %c0_4] : memref<8x16xf32, #tpu.memory_space<vmem>>, vector<8x16xf32>
    tpu.vector_store %arg4[%c0_3, %c0_4], %3 {strides = array<i32>} : memref<8x16xf32, #tpu.memory_space<vmem>>, vector<8x16xf32>,
    return
  }
  func.func @transform_0(%arg0: i32, %arg1: i32) -> (i32, i32) {
    %c0_i32 = arith.constant 0 : i32
    return %arg0, %arg1 : i32, i32
  }
  func.func @transform_1(%arg0: i32, %arg1: i32) -> (i32, i32) {
    %c0_i32 = arith.constant 0 : i32
    %c0_i32_0 = arith.constant 0 : i32
    return %arg0, %c0_i32 : i32, i32
  }
  func.func @transform_2(%arg0: i32, %arg1: i32) -> (i32, i32) {
    %c0_i32 = arith.constant 0 : i32
    return %arg0, %arg1 : i32, i32
  }
}

</mosaic_0001>

<llo_original>
// kernel: tpu_custom_call.1
$region0: #{tpu_custom_call.1}
  #allocation0 [shape = 'u32[]', space=smem, size = 0x4, offset = 0x4, fixed_abs, tag = 'smem constant byte address 0x4 - core index']
  #allocation1 [shape = 'u32[144,128]{1,0:T(1,128)}', space=vmem, size = 0x12000, scoped, tag = 'internal scratch']
  %s0 = inlined_call_operand.vmem [shape: f32[8,16], index: 0, kind: input, shape index: {}]
  %s1 = inlined_call_operand.vmem [shape: f32[8,1], index: 1, kind: input, shape index: {}]
  %s2 = inlined_call_operand.hbm [shape: f32[8,16], index: 2, kind: output, shape index: {}]
  %s3 = sld [smem:[#allocation0]]
  $region18: #{tpu_custom_call.1} parent=0
    _
  %s5 = ssub.s32 1, %s3
  %s6 = scalar_select 0, %s5, %s3
  $region1: #{tpu_custom_call.1} parent=0
    #allocation2 [shape = 'u8[4096]{0}', space=vmem, size = 0x1000, scoped, tag = 'output window, operand 0, single buffered']
    #allocation3 [shape = 's32[1]{0}', space=sflag, size = 0x4, scoped, tag = 'scoped memory for tpu_custom_call.1']
    %7 = vsyncpa [#allocation3], 0
    // Predicated region
    $region2: #{tpu_custom_call.1} parent=1 // pred_check
      _
    $region3: #{tpu_custom_call.1} parent=1 // pred_check_branch
      %9 = sbr.rel (0) target = $region5
    $region4: #{tpu_custom_call.1} parent=1 // pred_region
      _
    $region5: #{tpu_custom_call.1} parent=1 // pred_fallthru
      _
    // Predicated region
    $region6: #{tpu_custom_call.1} parent=1 // pred_check
      _
    $region7: #{tpu_custom_call.1} parent=1 // pred_check_branch
      %11 = sbr.rel (0) target = $region9
    $region8: #{tpu_custom_call.1} parent=1 // pred_region
      _
    $region9: #{tpu_custom_call.1} parent=1 // pred_fallthru
      _
    %v12 = vld [vmem:[%s0] sm:$0xff]
    %v13 = vld [vmem:[%s1] sm:$0xff]
    %15 = vset.pattern.permute.xlu0 0
    %16 = vperm.xlu0 %15, %v13
    %v17 = vpop.permute.xlu0 %16
    %v19 = vmul.f32 %v12, %v17
    %vm20 = vcmask 130048
    %21 = vst.msk [vmem:[#allocation2] sm:$0xff] %vm20, %v19
    // Predicated region
    $region10: #{tpu_custom_call.1} parent=1 // pred_check
      _
    $region11: #{tpu_custom_call.1} parent=1 // pred_check_branch
      %23 = sbr.rel (0) target = $region13
    $region12: #{tpu_custom_call.1} parent=1 // pred_region
      %s25 = ssub.s32 128, 128
      %26 = vsyncadd [#allocation3], %s25
      %s28 = sshll.u32 [#allocation2], 4
      %s29 = int_to_ptr.vmem [resolvable:$true] %s28
      %31 = dma.vmem_to_hbm [thread:$0]  %s29, 128, %s2, [#allocation3]
    $region13: #{tpu_custom_call.1} parent=1 // pred_fallthru
      _
    // Predicated region
    $region14: #{tpu_custom_call.1} parent=1 // pred_check
      _
    $region15: #{tpu_custom_call.1} parent=1 // pred_check_branch
      %33 = sbr.rel (0) target = $region17
    $region16: #{tpu_custom_call.1} parent=1 // pred_region
      %34 = dma.done [#allocation3], 128
    $region17: #{tpu_custom_call.1} parent=1 // pred_fallthru
      _
    %35 = vsyncpa [#allocation3], 1

</llo_original>
